<compile_context>
chip_gen: v6e
topology: v6e:2x2x1
jax: 0.10.0
libtpu: 0.0.40
codegen_flags: <defaults>
</compile_context>

<pallas_src>
import functools

import jax
import jax.numpy as jnp
from jax.experimental import pallas as pl
from jax.experimental.pallas import tpu as pltpu


_ACTIVATIONS = {
    "relu": lambda x: jnp.maximum(x, 0.0),
    "tanh": jnp.tanh,
    "sigmoid": jax.nn.sigmoid,
    "gelu": jax.nn.gelu,
}


# --------------------------------------------------------------------------
# Kernel
# --------------------------------------------------------------------------
def _fused_mlp_kernel(*refs, n_layers, activation, compute_dtype, lane_reduce_last):
    """Fused MLP tile: h = act(x @ W0 + b0) -> ... -> y = h @ Wn + bn.

    refs = (x_ref, w0, b0, w1, b1, ..., w_{n-1}, b_{n-1}, o_ref).
    All weight/bias refs are full-extent, VMEM-resident blocks. Matmul
    operands are `compute_dtype`; accumulation, bias and activation are f32.
    """
    x_ref = refs[0]
    o_ref = refs[-1]
    wb = refs[1:-1]
    act = _ACTIVATIONS[activation]

    h = x_ref[...]
    if h.dtype != compute_dtype:
        h = h.astype(compute_dtype)

    for li in range(n_layers):
        w = wb[2 * li][...]
        b = wb[2 * li + 1][...]  # float32 (1, N)
        last = li == n_layers - 1

        if last and lane_reduce_last:
            # Unpacked fallback with out_dim == 1: weight arrives as (1, K).
            # VPU multiply + XLU lane reduction instead of a 1-column MXU pass.
            y = jnp.sum(
                h.astype(jnp.float32) * w.astype(jnp.float32),
                axis=-1, keepdims=True,
            ) + b
        else:
            y = jnp.dot(h, w, preferred_element_type=jnp.float32) + b

        if not last:
            y = act(y)
            # dropout (p=0.1) is identity in eval mode.
            h = y.astype(compute_dtype)  # stay in compute dtype between layers
        else:
            h = y

    o_ref[...] = h.astype(o_ref.dtype)


# --------------------------------------------------------------------------
# pallas_call wrapper
# --------------------------------------------------------------------------
def _fused_mlp_pallas(xk, wb, out_cols, out_dtype, *, tm, n_layers, activation,
                      compute_dtype, lane_reduce_last):
    """Single fused pallas_call over row-blocks of xk: (Mk, Kk) -> (Mk, out_cols)."""
    Mk, Kk = xk.shape
    grid_m = pl.cdiv(Mk, tm)  # ragged last block handled by Pallas (no padding)

    in_specs = [pl.BlockSpec((tm, Kk), lambda i: (i, 0))]
    for a in wb:
        # Full-extent block, constant index -> stays resident in VMEM.
        in_specs.append(pl.BlockSpec(a.shape, lambda i: (0, 0)))

    flops = sum(2 * Mk * int(wb[2 * li].shape[0]) * int(wb[2 * li].shape[1])
                for li in range(n_layers))
    bytes_accessed = (
        int(xk.size) * jnp.dtype(xk.dtype).itemsize
        + Mk * out_cols * jnp.dtype(out_dtype).itemsize
        + sum(int(a.size) * jnp.dtype(a.dtype).itemsize for a in wb)
    )

    kernel = functools.partial(
        _fused_mlp_kernel,
        n_layers=n_layers,
        activation=activation,
        compute_dtype=compute_dtype,
        lane_reduce_last=lane_reduce_last,
    )

    return pl.pallas_call(
        kernel,
        out_shape=jax.ShapeDtypeStruct((Mk, out_cols), out_dtype),
        grid_spec=pltpu.PrefetchScalarGridSpec(
            num_scalar_prefetch=0,
            grid=(grid_m,),
            in_specs=in_specs,
            out_specs=pl.BlockSpec((tm, out_cols), lambda i: (i, 0)),
        ),
        compiler_params=pltpu.CompilerParams(
            dimension_semantics=("parallel",),
            # Explicit VMEM budget: plenty for ~2 MiB of double-buffered x,
            # <1 MiB of resident weights and the f32 intermediates, and safely
            # below v7x's 64 MiB physical VMEM.
            vmem_limit_bytes=48 * 1024 * 1024,
        ),
        cost_estimate=pl.CostEstimate(
            flops=flops, transcendentals=0, bytes_accessed=bytes_accessed
        ),
    )(xk, *wb)


# --------------------------------------------------------------------------
# Host-side helpers
# --------------------------------------------------------------------------
def _round_up(v, m):
    return ((v + m - 1) // m) * m


def _pick_tm(m_rows, row_bytes, *, min_steps=2, tile_bytes_cap=1 << 20):
    """Row tile: ~1 MiB of x per step, multiple of 8, and (when possible)
    at least `min_steps` grid steps so both v7x TensorCores get work."""
    cap_rows = max(8, ((tile_bytes_cap // max(row_bytes, 1)) // 8) * 8)
    desired = _round_up((m_rows + min_steps - 1) // min_steps, 8)
    tm = min(desired, cap_rows, _round_up(m_rows, 8))
    return max(tm, 8)


def _block_diag(w, pack):
    """Block-diagonal replication of w (in, out) -> (pack*in, pack*out)."""
    fi, fo = w.shape
    wp = jnp.zeros((pack * fi, pack * fo), w.dtype)
    for p in range(pack):
        wp = wp.at[p * fi:(p + 1) * fi, p * fo:(p + 1) * fo].set(w)
    return wp


def init_mlp_params(key, input_dim, hidden_dims, output_dim, dtype=jnp.float32):
    """Deterministic init matching torch.nn.Linear shapes.

    Each layer stores W as (in, out) (torch weight transposed) and b (out,).
    """
    dims = [input_dim, *hidden_dims, output_dim]
    params = []
    for i in range(len(dims) - 1):
        fan_in, fan_out = dims[i], dims[i + 1]
        key, kw, kb = jax.random.split(key, 3)
        bound = 1.0 / jnp.sqrt(fan_in)
        w = jax.random.uniform(kw, (fan_in, fan_out), dtype, -bound, bound)
        b = jax.random.uniform(kb, (fan_out,), dtype, -bound, bound)
        params.append((w, b))
    return params


def mlp_forward(x, params, *, activation="relu", compute_dtype=None, pack=4,
                min_grid_steps=2):
    """MLP forward: [Linear -> act -> (Dropout=id)] * H -> Linear, one fused kernel.

    compute_dtype: matmul-operand dtype (pass jnp.bfloat16 on v6e/v7x to halve
    the HBM-bound x read; accumulation/bias/activation stay f32). Default:
    x.dtype (f32 here so the demo matches the reference to 1e-5).
    pack: fold this many logical rows into one physical row with
    block-diagonal weights (free reshape; only applied when M divides and the
    packed weights stay small).
    """
    orig_shape = x.shape
    in_dim = orig_shape[-1]
    out_dim = params[-1][0].shape[1]
    n_layers = len(params)
    out_dtype = x.dtype
    if compute_dtype is None:
        compute_dtype = x.dtype

    xm = x.reshape(-1, in_dim)
    M = xm.shape[0]

    # ---- row packing decision (lane / MXU density) -------------------------
    max_dim = max([in_dim, out_dim] + [w.shape[1] for w, _ in params])
    packed_w_bytes = sum(
        pack * w.shape[0] * pack * w.shape[1] * jnp.dtype(compute_dtype).itemsize
        for w, _ in params
    )
    use_pack = (
        pack > 1
        and M > 0
        and M % pack == 0
        and pack * max_dim <= 512          # keep layers within a few MXU tiles
        and packed_w_bytes <= (4 << 20)    # keep weights trivially VMEM-resident
    )
    p = pack if use_pack else 1

    lane_reduce_last = (p == 1 and out_dim == 1)

    # Free, layout-preserving reshape (contiguous row-major) — no HBM copy.
    xk = xm.reshape(M // p, p * in_dim)
    if xk.dtype != compute_dtype:
        xk = xk.astype(compute_dtype)

    # Weights / biases (block-diagonal when packed); biases stay f32 rows.
    wb = []
    for li, (w, b) in enumerate(params):
        if p > 1:
            w = _block_diag(w, p)
            b = jnp.tile(b, p)
        if li == n_layers - 1 and lane_reduce_last:
            w = w.reshape(1, -1)  # (prev, 1) -> (1, prev) for the lane-reduce path
        wb.append(w.astype(compute_dtype))
        wb.append(b.reshape(1, -1).astype(jnp.float32))

    row_bytes = xk.shape[1] * jnp.dtype(compute_dtype).itemsize
    tm = _pick_tm(xk.shape[0], row_bytes, min_steps=min_grid_steps)

    out = _fused_mlp_pallas(
        xk, wb, p * out_dim, out_dtype,
        tm=tm, n_layers=n_layers, activation=activation,
        compute_dtype=compute_dtype, lane_reduce_last=lane_reduce_last,
    )
    # (M/p, p*out_dim) -> (..., out_dim): free reshape, row-major order matches.
    return out.reshape(*orig_shape[:-1], out_dim)


def mlp_reference(x, params, *, activation="relu"):
    """Pure-JAX reference for correctness checking."""
    act = _ACTIVATIONS[activation]
    orig_shape = x.shape
    xm = x.reshape(-1, orig_shape[-1])
    n_layers = len(params)
    for li, (w, b) in enumerate(params):
        xm = xm @ w + b
        if li != n_layers - 1:
            xm = act(xm)
    return xm.reshape(*orig_shape[:-1], params[-1][0].shape[1])


if __name__ == "__main__":
    key = jax.random.PRNGKey(0)

    input_dim = 32
    hidden_dims = (64, 64)
    output_dim = 1

    k_x, k_p = jax.random.split(key)
    params = init_mlp_params(k_p, input_dim, hidden_dims, output_dim)

    # Primary check: (batch=4, seq=8, input_dim=32), features on the last axis.
    x = jax.random.normal(k_x, (4, 8, input_dim), dtype=jnp.float32)
    out = jax.block_until_ready(mlp_forward(x, params))
    ref = mlp_reference(x, params)
    assert out.shape == (4, 8, output_dim), out.shape
    assert jnp.allclose(out, ref, atol=1e-5, rtol=1e-5), "mismatch vs reference"

    # Extra checks: multi-step grid + ragged last block (packed path), and the
    # unpacked fallback when rows % pack != 0.
    for shape in ((16, 90, input_dim), (7, 6, input_dim)):
        xt = jax.random.normal(jax.random.PRNGKey(1), shape, dtype=jnp.float32)
        ot = jax.block_until_ready(mlp_forward(xt, params))
        rt = mlp_reference(xt, params)
        assert ot.shape == (*shape[:-1], output_dim), (shape, ot.shape)
        assert jnp.allclose(ot, rt, atol=1e-5, rtol=1e-5), f"mismatch at {shape}"

    print("KERNEL_OK")
</pallas_src>

<mosaic_0001>
module attributes {stable_mosaic.version = 11 : i64} {
  func.func @_fused_mlp_kernel(%arg0: i32, %arg1: memref<8x128xf32, #tpu.memory_space<vmem>>, %arg2: memref<128x256xf32, #tpu.memory_space<vmem>>, %arg3: memref<1x256xf32, #tpu.memory_space<vmem>>, %arg4: memref<256x256xf32, #tpu.memory_space<vmem>>, %arg5: memref<1x256xf32, #tpu.memory_space<vmem>>, %arg6: memref<256x4xf32, #tpu.memory_space<vmem>>, %arg7: memref<1x4xf32, #tpu.memory_space<vmem>>, %arg8: memref<8x4xf32, #tpu.memory_space<vmem>>) attributes {dimension_semantics = [#tpu.dimension_semantics<parallel>], iteration_bounds = array<i64: 1>, scalar_prefetch = 0 : i64, scratch_operands = 0 : i64, tpu.core_type = #tpu.core_type<tc>, window_params = [{transform_indices = @transform_0, window_bounds = array<i64: 8, 128>}, {pipeline_mode = #tpu.pipeline_mode<synchronous>, transform_indices = @transform_1, window_bounds = array<i64: 128, 256>}, {pipeline_mode = #tpu.pipeline_mode<synchronous>, transform_indices = @transform_2, window_bounds = array<i64: 1, 256>}, {pipeline_mode = #tpu.pipeline_mode<synchronous>, transform_indices = @transform_3, window_bounds = array<i64: 256, 256>}, {pipeline_mode = #tpu.pipeline_mode<synchronous>, transform_indices = @transform_4, window_bounds = array<i64: 1, 256>}, {pipeline_mode = #tpu.pipeline_mode<synchronous>, transform_indices = @transform_5, window_bounds = array<i64: 256, 4>}, {pipeline_mode = #tpu.pipeline_mode<synchronous>, transform_indices = @transform_6, window_bounds = array<i64: 1, 4>}, {transform_indices = @transform_7, window_bounds = array<i64: 8, 4>}]} {
    %c0 = arith.constant 0 : index
    %c0_0 = arith.constant 0 : index
    %0 = vector.load %arg1[%c0, %c0_0] : memref<8x128xf32, #tpu.memory_space<vmem>>, vector<8x128xf32>
    %c0_1 = arith.constant 0 : index
    %c0_2 = arith.constant 0 : index
    %1 = vector.load %arg2[%c0_1, %c0_2] : memref<128x256xf32, #tpu.memory_space<vmem>>, vector<128x256xf32>
    %c0_3 = arith.constant 0 : index
    %c0_4 = arith.constant 0 : index
    %2 = vector.load %arg3[%c0_3, %c0_4] : memref<1x256xf32, #tpu.memory_space<vmem>>, vector<1x256xf32>
    %cst = arith.constant dense<0.000000e+00> : vector<8x256xf32>
    %3 = tpu.matmul %0, %1, %cst {dimension_numbers = #tpu.dot_dimension_numbers<[1], [0], [0], [1], [0, 0, 1, 1], [], []>} : vector<8x128xf32>, vector<128x256xf32>, vector<8x256xf32> -> vector<8x256xf32>
    %4 = vector.broadcast %2 : vector<1x256xf32> to vector<8x256xf32>
    %5 = arith.addf %3, %4 : vector<8x256xf32>
    %cst_5 = arith.constant 0.000000e+00 : f32
    %6 = vector.broadcast %cst_5 : f32 to vector<8x256xf32>
    %7 = arith.maximumf %5, %6 : vector<8x256xf32>
    %c0_6 = arith.constant 0 : index
    %c0_7 = arith.constant 0 : index
    %8 = vector.load %arg4[%c0_6, %c0_7] : memref<256x256xf32, #tpu.memory_space<vmem>>, vector<256x256xf32>
    %c0_8 = arith.constant 0 : index
    %c0_9 = arith.constant 0 : index
    %9 = vector.load %arg5[%c0_8, %c0_9] : memref<1x256xf32, #tpu.memory_space<vmem>>, vector<1x256xf32>
    %cst_10 = arith.constant dense<0.000000e+00> : vector<8x256xf32>
    %10 = tpu.matmul %7, %8, %cst_10 {dimension_numbers = #tpu.dot_dimension_numbers<[1], [0], [0], [1], [0, 0, 1, 1], [], []>} : vector<8x256xf32>, vector<256x256xf32>, vector<8x256xf32> -> vector<8x256xf32>
    %11 = vector.broadcast %9 : vector<1x256xf32> to vector<8x256xf32>
    %12 = arith.addf %10, %11 : vector<8x256xf32>
    %cst_11 = arith.constant 0.000000e+00 : f32
    %13 = vector.broadcast %cst_11 : f32 to vector<8x256xf32>
    %14 = arith.maximumf %12, %13 : vector<8x256xf32>
    %c0_12 = arith.constant 0 : index
    %c0_13 = arith.constant 0 : index
    %15 = vector.load %arg6[%c0_12, %c0_13] : memref<256x4xf32, #tpu.memory_space<vmem>>, vector<256x4xf32>
    %c0_14 = arith.constant 0 : index
    %c0_15 = arith.constant 0 : index
    %16 = vector.load %arg7[%c0_14, %c0_15] : memref<1x4xf32, #tpu.memory_space<vmem>>, vector<1x4xf32>
    %cst_16 = arith.constant dense<0.000000e+00> : vector<8x4xf32>
    %17 = tpu.matmul %14, %15, %cst_16 {dimension_numbers = #tpu.dot_dimension_numbers<[1], [0], [0], [1], [0, 0, 1, 1], [], []>} : vector<8x256xf32>, vector<256x4xf32>, vector<8x4xf32> -> vector<8x4xf32>
    %18 = vector.broadcast %16 : vector<1x4xf32> to vector<8x4xf32>
    %19 = arith.addf %17, %18 : vector<8x4xf32>
    %c0_17 = arith.constant 0 : index
    %c0_18 = arith.constant 0 : index
    %20 = vector.load %arg8[%c0_17, %c0_18] : memref<8x4xf32, #tpu.memory_space<vmem>>, vector<8x4xf32>
    tpu.vector_store %arg8[%c0_17, %c0_18], %19 {strides = array<i32>} : memref<8x4xf32, #tpu.memory_space<vmem>>, vector<8x4xf32>,
    return
  }
  func.func @transform_0(%arg0: i32) -> (i32, i32) {
    %c0_i32 = arith.constant 0 : i32
    %c0_i32_0 = arith.constant 0 : i32
    return %arg0, %c0_i32 : i32, i32
  }
  func.func @transform_1(%arg0: i32) -> (i32, i32) {
    %c0_i32 = arith.constant 0 : i32
    %c0_i32_0 = arith.constant 0 : i32
    %c0_i32_1 = arith.constant 0 : i32
    return %c0_i32, %c0_i32_0 : i32, i32
  }
  func.func @transform_2(%arg0: i32) -> (i32, i32) {
    %c0_i32 = arith.constant 0 : i32
    %c0_i32_0 = arith.constant 0 : i32
    %c0_i32_1 = arith.constant 0 : i32
    return %c0_i32, %c0_i32_0 : i32, i32
  }
  func.func @transform_3(%arg0: i32) -> (i32, i32) {
    %c0_i32 = arith.constant 0 : i32
    %c0_i32_0 = arith.constant 0 : i32
    %c0_i32_1 = arith.constant 0 : i32
    return %c0_i32, %c0_i32_0 : i32, i32
  }
  func.func @transform_4(%arg0: i32) -> (i32, i32) {
    %c0_i32 = arith.constant 0 : i32
    %c0_i32_0 = arith.constant 0 : i32
    %c0_i32_1 = arith.constant 0 : i32
    return %c0_i32, %c0_i32_0 : i32, i32
  }
  func.func @transform_5(%arg0: i32) -> (i32, i32) {
    %c0_i32 = arith.constant 0 : i32
    %c0_i32_0 = arith.constant 0 : i32
    %c0_i32_1 = arith.constant 0 : i32
    return %c0_i32, %c0_i32_0 : i32, i32
  }
  func.func @transform_6(%arg0: i32) -> (i32, i32) {
    %c0_i32 = arith.constant 0 : i32
    %c0_i32_0 = arith.constant 0 : i32
    %c0_i32_1 = arith.constant 0 : i32
    return %c0_i32, %c0_i32_0 : i32, i32
  }
  func.func @transform_7(%arg0: i32) -> (i32, i32) {
    %c0_i32 = arith.constant 0 : i32
    %c0_i32_0 = arith.constant 0 : i32
    return %arg0, %c0_i32 : i32, i32
  }
}

</mosaic_0001>

<llo_original>
// kernel: tpu_custom_call.1
$region0: #{tpu_custom_call.1}
  #allocation0 [shape = 'u32[]', space=smem, size = 0x4, offset = 0x4, fixed_abs, tag = 'smem constant byte address 0x4 - core index']
  #allocation1 [shape = 'u32[144,128]{1,0:T(1,128)}', space=vmem, size = 0x12000, scoped, tag = 'internal scratch']
  %s0 = inlined_call_operand.vmem [shape: f32[8,128], index: 0, kind: input, shape index: {}]
  %s1 = inlined_call_operand.vmem [shape: f32[128,256], index: 1, kind: input, shape index: {}]
  %s2 = inlined_call_operand.hbm [shape: f32[1,256], index: 2, kind: input, shape index: {}]
  %s3 = inlined_call_operand.hbm [shape: f32[256,256], index: 3, kind: input, shape index: {}]
  %s4 = inlined_call_operand.hbm [shape: f32[1,256], index: 4, kind: input, shape index: {}]
  %s5 = inlined_call_operand.vmem [shape: f32[256,4], index: 5, kind: input, shape index: {}]
  %s6 = inlined_call_operand.vmem [shape: f32[1,4], index: 6, kind: input, shape index: {}]
  %s7 = inlined_call_operand.vmem [shape: f32[8,4], index: 7, kind: output, shape index: {}]
  %s8 = sld [smem:[#allocation0]]
  $region50: #{tpu_custom_call.1} parent=0
    _
  %s10 = ssub.s32 1, %s8
  %s11 = scalar_select 0, %s10, %s8
  $region1: #{tpu_custom_call.1} parent=0
    #allocation2 [shape = 'u8[1024]{0}', space=vmem, size = 0x400, scoped, tag = 'input window, operand 2, single buffered']
    #allocation3 [shape = 's32[1]{0}', space=sflag, size = 0x4, scoped, tag = 'scoped memory for tpu_custom_call.1']
    #allocation4 [shape = 'u8[262144]{0}', space=vmem, size = 0x40000, scoped, tag = 'input window, operand 3, single buffered']
    #allocation5 [shape = 's32[1]{0}', space=sflag, size = 0x4, scoped, tag = 'scoped memory for tpu_custom_call.1']
    #allocation6 [shape = 'u8[1024]{0}', space=vmem, size = 0x400, scoped, tag = 'input window, operand 4, single buffered']
    %12 = vsyncpa [#allocation3], 0
    %13 = vsyncpa [#allocation5], 0
    // Predicated region
    $region2: #{tpu_custom_call.1} parent=1 // pred_check
      _
    $region3: #{tpu_custom_call.1} parent=1 // pred_check_branch
      %15 = sbr.rel (0) target = $region5
    $region4: #{tpu_custom_call.1} parent=1 // pred_region
      _
    $region5: #{tpu_custom_call.1} parent=1 // pred_fallthru
      _
    // Predicated region
    $region6: #{tpu_custom_call.1} parent=1 // pred_check
      _
    $region7: #{tpu_custom_call.1} parent=1 // pred_check_branch
      %17 = sbr.rel (0) target = $region9
    $region8: #{tpu_custom_call.1} parent=1 // pred_region
      _
    $region9: #{tpu_custom_call.1} parent=1 // pred_fallthru
      _
    // Predicated region
    $region10: #{tpu_custom_call.1} parent=1 // pred_check
      _
    $region11: #{tpu_custom_call.1} parent=1 // pred_check_branch
      %19 = sbr.rel (0) target = $region13
    $region12: #{tpu_custom_call.1} parent=1 // pred_region
      %s21 = ssub.s32 32, 32
      %22 = vsyncadd [#allocation3], %s21
      %s24 = sshll.u32 [#allocation2], 4
      %s25 = int_to_ptr.vmem [resolvable:$true] %s24
      %27 = dma.hbm_to_vmem [thread:$0]  %s2, 32, %s25, [#allocation3]
    $region13: #{tpu_custom_call.1} parent=1 // pred_fallthru
      _
    // Predicated region
    $region14: #{tpu_custom_call.1} parent=1 // pred_check
      _
    $region15: #{tpu_custom_call.1} parent=1 // pred_check_branch
      %29 = sbr.rel (0) target = $region17
    $region16: #{tpu_custom_call.1} parent=1 // pred_region
      %s31 = ssub.s32 8192, 8192
      %32 = vsyncadd [#allocation5], %s31
      %s33 = sshll.u32 [#allocation4], 4
      %s34 = int_to_ptr.vmem [resolvable:$true] %s33
      %39 = dma.hbm_to_vmem [thread:$0]  %s3, 8192, %s34, [#allocation5], 256, 256, 16
    $region17: #{tpu_custom_call.1} parent=1 // pred_fallthru
      _
    // Predicated region
    $region18: #{tpu_custom_call.1} parent=1 // pred_check
      _
    $region19: #{tpu_custom_call.1} parent=1 // pred_check_branch
      %41 = sbr.rel (0) target = $region21
    $region20: #{tpu_custom_call.1} parent=1 // pred_region
      %s43 = ssub.s32 32, 32
      %44 = vsyncadd [#allocation5], %s43
      %s46 = sshll.u32 [#allocation6], 4
      %s47 = int_to_ptr.vmem [resolvable:$true] %s46
      %49 = dma.hbm_to_vmem [thread:$0]  %s4, 32, %s47, [#allocation5]
    $region21: #{tpu_custom_call.1} parent=1 // pred_fallthru
      _
    // Predicated region
    $region22: #{tpu_custom_call.1} parent=1 // pred_check
      _
    $region23: #{tpu_custom_call.1} parent=1 // pred_check_branch
      %51 = sbr.rel (0) target = $region25
    $region24: #{tpu_custom_call.1} parent=1 // pred_region
      _
    $region25: #{tpu_custom_call.1} parent=1 // pred_fallthru
      _
    // Predicated region
    $region26: #{tpu_custom_call.1} parent=1 // pred_check
      _
    $region27: #{tpu_custom_call.1} parent=1 // pred_check_branch
      %53 = sbr.rel (0) target = $region29
    $region28: #{tpu_custom_call.1} parent=1 // pred_region
      _
    $region29: #{tpu_custom_call.1} parent=1 // pred_fallthru
      _
    // Predicated region
    $region30: #{tpu_custom_call.1} parent=1 // pred_check
      _
    $region31: #{tpu_custom_call.1} parent=1 // pred_check_branch
      %55 = sbr.rel (0) target = $region33
    $region32: #{tpu_custom_call.1} parent=1 // pred_region
      %56 = dma.done [#allocation3], 32
    $region33: #{tpu_custom_call.1} parent=1 // pred_fallthru
      _
    // Predicated region
    $region34: #{tpu_custom_call.1} parent=1 // pred_check
      _
    $region35: #{tpu_custom_call.1} parent=1 // pred_check_branch
      %58 = sbr.rel (0) target = $region37
    $region36: #{tpu_custom_call.1} parent=1 // pred_region
      %59 = dma.done [#allocation5], 8192
    $region37: #{tpu_custom_call.1} parent=1 // pred_fallthru
      _
    // Predicated region
    $region38: #{tpu_custom_call.1} parent=1 // pred_check
      _
    $region39: #{tpu_custom_call.1} parent=1 // pred_check_branch
      %61 = sbr.rel (0) target = $region41
    $region40: #{tpu_custom_call.1} parent=1 // pred_region
      %62 = dma.done [#allocation5], 32
    $region41: #{tpu_custom_call.1} parent=1 // pred_fallthru
      _
    %v63 = vld [vmem:[%s0] sm:$0xff]
    %v64 = vld [vmem:[%s1] sm:$0xff]
    %v65 = vld [vmem:[%s1 + $0x8] sm:$0xff]
    %v66 = vld [vmem:[%s1 + $0x10] sm:$0xff]
    %v67 = vld [vmem:[%s1 + $0x18] sm:$0xff]
    %v68 = vld [vmem:[%s1 + $0x20] sm:$0xff]
    %v69 = vld [vmem:[%s1 + $0x28] sm:$0xff]
    %v70 = vld [vmem:[%s1 + $0x30] sm:$0xff]
    %v71 = vld [vmem:[%s1 + $0x38] sm:$0xff]
    %v72 = vld [vmem:[%s1 + $0x40] sm:$0xff]
    %v73 = vld [vmem:[%s1 + $0x48] sm:$0xff]
    %v74 = vld [vmem:[%s1 + $0x50] sm:$0xff]
    %v75 = vld [vmem:[%s1 + $0x58] sm:$0xff]
    %v76 = vld [vmem:[%s1 + $0x60] sm:$0xff]
    %v77 = vld [vmem:[%s1 + $0x68] sm:$0xff]
    %v78 = vld [vmem:[%s1 + $0x70] sm:$0xff]
    %v79 = vld [vmem:[%s1 + $0x78] sm:$0xff]
    %v80 = vld [vmem:[%s1 + $0x80] sm:$0xff]
    %v81 = vld [vmem:[%s1 + $0x88] sm:$0xff]
    %v82 = vld [vmem:[%s1 + $0x90] sm:$0xff]
    %v83 = vld [vmem:[%s1 + $0x98] sm:$0xff]
    %v84 = vld [vmem:[%s1 + $0xa0] sm:$0xff]
    %v85 = vld [vmem:[%s1 + $0xa8] sm:$0xff]
    %v86 = vld [vmem:[%s1 + $0xb0] sm:$0xff]
    %v87 = vld [vmem:[%s1 + $0xb8] sm:$0xff]
    %v88 = vld [vmem:[%s1 + $0xc0] sm:$0xff]
    %v89 = vld [vmem:[%s1 + $0xc8] sm:$0xff]
    %v90 = vld [vmem:[%s1 + $0xd0] sm:$0xff]
    %v91 = vld [vmem:[%s1 + $0xd8] sm:$0xff]
    %v92 = vld [vmem:[%s1 + $0xe0] sm:$0xff]
    %v93 = vld [vmem:[%s1 + $0xe8] sm:$0xff]
    %v94 = vld [vmem:[%s1 + $0xf0] sm:$0xff]
    %v95 = vld [vmem:[%s1 + $0xf8] sm:$0xff]
    %v96 = vld [vmem:[#allocation2] sm:$0x3]
    %v98 = vlaneseq
    %v99 = vshrl.u32 %v98, 7
    %v100 = vsub.s32 0, %v99
    %v101 = vrot.slane %v96, %v100
    %v102 = vlaneseq
    %v103 = vshrl.u32 %v102, 7
    %v104 = vsub.s32 1, %v103
    %v105 = vrot.slane %v96, %v104
    %108 = vmatprep.subr.mxu0 %v95
    %109 = vmatpush1.msra.mxu0 %v94
    %110 = vmatprep.subr.mxu0 %v93
    %111 = vmatpush1.msra.mxu0 %v92
    %112 = vmatprep.subr.mxu0 %v91
    %113 = vmatpush1.msra.mxu0 %v90
    %114 = vmatprep.subr.mxu0 %v89
    %115 = vmatpush1.msra.mxu0 %v88
    %116 = vmatprep.subr.mxu0 %v87
    %117 = vmatpush1.msra.mxu0 %v86
    %118 = vmatprep.subr.mxu0 %v85
    %119 = vmatpush1.msra.mxu0 %v84
    %120 = vmatprep.subr.mxu0 %v83
    %121 = vmatpush1.msra.mxu0 %v82
    %122 = vmatprep.subr.mxu0 %v81
    %123 = vmatpush1.msra.mxu0 %v80
    %124 = vmatprep.subr.mxu0 %v79
    %125 = vmatpush1.msra.mxu0 %v78
    %126 = vmatprep.subr.mxu0 %v77
    %127 = vmatpush1.msra.mxu0 %v76
    %128 = vmatprep.subr.mxu0 %v75
    %129 = vmatpush1.msra.mxu0 %v74
    %130 = vmatprep.subr.mxu0 %v73
    %131 = vmatpush1.msra.mxu0 %v72
    %132 = vmatprep.subr.mxu0 %v71
    %133 = vmatpush1.msra.mxu0 %v70
    %134 = vmatprep.subr.mxu0 %v69
    %135 = vmatpush1.msra.mxu0 %v68
    %136 = vmatprep.subr.mxu0 %v67
    %137 = vmatpush1.msra.mxu0 %v66
    %138 = vmatprep.subr.mxu0 %v65
    %139 = vmatpush1.msra.mxu0 %v64
    %140 = vmatprep.subr.mxu0 0.0
    %141 = vmatpush2.msra.mxu0 0.0
    %142 = vmatprep.subr.mxu0 0.0
    %143 = vmatpush2.msra.mxu0 0.0
    %144 = vmatprep.subr.mxu0 0.0
    %145 = vmatpush2.msra.mxu0 0.0
    %146 = vmatprep.subr.mxu0 0.0
    %147 = vmatpush2.msra.mxu0 0.0
    %148 = vmatprep.subr.mxu0 0.0
    %149 = vmatpush2.msra.mxu0 0.0
    %150 = vmatprep.subr.mxu0 0.0
    %151 = vmatpush2.msra.mxu0 0.0
    %152 = vmatprep.subr.mxu0 0.0
    %153 = vmatpush2.msra.mxu0 0.0
    %154 = vmatprep.subr.mxu0 0.0
    %155 = vmatpush2.msra.mxu0 0.0
    %156 = vmatprep.subr.mxu0 0.0
    %157 = vmatpush2.msra.mxu0 0.0
    %158 = vmatprep.subr.mxu0 0.0
    %159 = vmatpush2.msra.mxu0 0.0
    %160 = vmatprep.subr.mxu0 0.0
    %161 = vmatpush2.msra.mxu0 0.0
    %162 = vmatprep.subr.mxu0 0.0
    %163 = vmatpush2.msra.mxu0 0.0
    %164 = vmatprep.subr.mxu0 0.0
    %165 = vmatpush2.msra.mxu0 0.0
    %166 = vmatprep.subr.mxu0 0.0
    %167 = vmatpush2.msra.mxu0 0.0
    %168 = vmatprep.subr.mxu0 0.0
    %169 = vmatpush2.msra.mxu0 0.0
    %170 = vmatprep.subr.mxu0 0.0
    %171 = vmatpush2.msra.mxu0 0.0
    %172 = vmatprep.mubr.f32.mxu0 0.0
    %173 = vmatmul.mubr.f32.gmra.mxu0 %v63
    %v174 = vpop.f32.mrf.mxu0
    %v175 = vadd.f32 %v101, %v174
    %v176 = vpop.f32.mrf.mxu0
    %v177 = vadd.f32 %v105, %v176
    %178 = vdwg.mxu0
    %v179 = vmax.f32 %v175, 0.0
    %v180 = vmax.f32 %v177, 0.0
    %v181 = vld [vmem:[#allocation4] sm:$0xff]
    %v182 = vld [vmem:[#allocation4 + $0x8] sm:$0xff]
    %v183 = vld [vmem:[#allocation4 + $0x10] sm:$0xff]
    %v184 = vld [vmem:[#allocation4 + $0x18] sm:$0xff]
    %v185 = vld [vmem:[#allocation4 + $0x20] sm:$0xff]
    %v186 = vld [vmem:[#allocation4 + $0x28] sm:$0xff]
    %v187 = vld [vmem:[#allocation4 + $0x30] sm:$0xff]
    %v188 = vld [vmem:[#allocation4 + $0x38] sm:$0xff]
    %v189 = vld [vmem:[#allocation4 + $0x40] sm:$0xff]
    %v190 = vld [vmem:[#allocation4 + $0x48] sm:$0xff]
    %v191 = vld [vmem:[#allocation4 + $0x50] sm:$0xff]
    %v192 = vld [vmem:[#allocation4 + $0x58] sm:$0xff]
    %v193 = vld [vmem:[#allocation4 + $0x60] sm:$0xff]
    %v194 = vld [vmem:[#allocation4 + $0x68] sm:$0xff]
    %v195 = vld [vmem:[#allocation4 + $0x70] sm:$0xff]
    %v196 = vld [vmem:[#allocation4 + $0x78] sm:$0xff]
    %v197 = vld [vmem:[#allocation4 + $0x80] sm:$0xff]
    %v198 = vld [vmem:[#allocation4 + $0x88] sm:$0xff]
    %v199 = vld [vmem:[#allocation4 + $0x90] sm:$0xff]
    %v200 = vld [vmem:[#allocation4 + $0x98] sm:$0xff]
    %v201 = vld [vmem:[#allocation4 + $0xa0] sm:$0xff]
    %v202 = vld [vmem:[#allocation4 + $0xa8] sm:$0xff]
    %v203 = vld [vmem:[#allocation4 + $0xb0] sm:$0xff]
    %v204 = vld [vmem:[#allocation4 + $0xb8] sm:$0xff]
    %v205 = vld [vmem:[#allocation4 + $0xc0] sm:$0xff]
    %v206 = vld [vmem:[#allocation4 + $0xc8] sm:$0xff]
    %v207 = vld [vmem:[#allocation4 + $0xd0] sm:$0xff]
    %v208 = vld [vmem:[#allocation4 + $0xd8] sm:$0xff]
    %v209 = vld [vmem:[#allocation4 + $0xe0] sm:$0xff]
    %v210 = vld [vmem:[#allocation4 + $0xe8] sm:$0xff]
    %v211 = vld [vmem:[#allocation4 + $0xf0] sm:$0xff]
    %v212 = vld [vmem:[#allocation4 + $0xf8] sm:$0xff]
    %v213 = vld [vmem:[#allocation4 + $0x100] sm:$0xff]
    %v214 = vld [vmem:[#allocation4 + $0x108] sm:$0xff]
    %v215 = vld [vmem:[#allocation4 + $0x110] sm:$0xff]
    %v216 = vld [vmem:[#allocation4 + $0x118] sm:$0xff]
    %v217 = vld [vmem:[#allocation4 + $0x120] sm:$0xff]
    %v218 = vld [vmem:[#allocation4 + $0x128] sm:$0xff]
    %v219 = vld [vmem:[#allocation4 + $0x130] sm:$0xff]
    %v220 = vld [vmem:[#allocation4 + $0x138] sm:$0xff]
    %v221 = vld [vmem:[#allocation4 + $0x140] sm:$0xff]
    %v222 = vld [vmem:[#allocation4 + $0x148] sm:$0xff]
    %v223 = vld [vmem:[#allocation4 + $0x150] sm:$0xff]
    %v224 = vld [vmem:[#allocation4 + $0x158] sm:$0xff]
    %v225 = vld [vmem:[#allocation4 + $0x160] sm:$0xff]
    %v226 = vld [vmem:[#allocation4 + $0x168] sm:$0xff]
    %v227 = vld [vmem:[#allocation4 + $0x170] sm:$0xff]
    %v228 = vld [vmem:[#allocation4 + $0x178] sm:$0xff]
    %v229 = vld [vmem:[#allocation4 + $0x180] sm:$0xff]
    %v230 = vld [vmem:[#allocation4 + $0x188] sm:$0xff]
    %v231 = vld [vmem:[#allocation4 + $0x190] sm:$0xff]
    %v232 = vld [vmem:[#allocation4 + $0x198] sm:$0xff]
    %v233 = vld [vmem:[#allocation4 + $0x1a0] sm:$0xff]
    %v234 = vld [vmem:[#allocation4 + $0x1a8] sm:$0xff]
    %v235 = vld [vmem:[#allocation4 + $0x1b0] sm:$0xff]
    %v236 = vld [vmem:[#allocation4 + $0x1b8] sm:$0xff]
    %v237 = vld [vmem:[#allocation4 + $0x1c0] sm:$0xff]
    %v238 = vld [vmem:[#allocation4 + $0x1c8] sm:$0xff]
    %v239 = vld [vmem:[#allocation4 + $0x1d0] sm:$0xff]
    %v240 = vld [vmem:[#allocation4 + $0x1d8] sm:$0xff]
    %v241 = vld [vmem:[#allocation4 + $0x1e0] sm:$0xff]
    %v242 = vld [vmem:[#allocation4 + $0x1e8] sm:$0xff]
    %v243 = vld [vmem:[#allocation4 + $0x1f0] sm:$0xff]
    %v244 = vld [vmem:[#allocation4 + $0x1f8] sm:$0xff]
    %v245 = vld [vmem:[#allocation6] sm:$0x3]
    %v247 = vlaneseq
    %v248 = vshrl.u32 %v247, 7
    %v249 = vsub.s32 0, %v248
    %v250 = vrot.slane %v245, %v249
    %v251 = vlaneseq
    %v252 = vshrl.u32 %v251, 7
    %v253 = vsub.s32 1, %v252
    %v254 = vrot.slane %v245, %v253
    %257 = vmatprep.subr.mxu0 %v212
    %258 = vmatpush1.msra.mxu0 %v211
    %259 = vmatprep.subr.mxu0 %v210
    %260 = vmatpush1.msra.mxu0 %v209
    %261 = vmatprep.subr.mxu0 %v208
    %262 = vmatpush1.msra.mxu0 %v207
    %263 = vmatprep.subr.mxu0 %v206
    %264 = vmatpush1.msra.mxu0 %v205
    %265 = vmatprep.subr.mxu0 %v204
    %266 = vmatpush1.msra.mxu0 %v203
    %267 = vmatprep.subr.mxu0 %v202
    %268 = vmatpush1.msra.mxu0 %v201
    %269 = vmatprep.subr.mxu0 %v200
    %270 = vmatpush1.msra.mxu0 %v199
    %271 = vmatprep.subr.mxu0 %v198
    %272 = vmatpush1.msra.mxu0 %v197
    %273 = vmatprep.subr.mxu0 %v196
    %274 = vmatpush1.msra.mxu0 %v195
    %275 = vmatprep.subr.mxu0 %v194
    %276 = vmatpush1.msra.mxu0 %v193
    %277 = vmatprep.subr.mxu0 %v192
    %278 = vmatpush1.msra.mxu0 %v191
    %279 = vmatprep.subr.mxu0 %v190
    %280 = vmatpush1.msra.mxu0 %v189
    %281 = vmatprep.subr.mxu0 %v188
    %282 = vmatpush1.msra.mxu0 %v187
    %283 = vmatprep.subr.mxu0 %v186
    %284 = vmatpush1.msra.mxu0 %v185
    %285 = vmatprep.subr.mxu0 %v184
    %286 = vmatpush1.msra.mxu0 %v183
    %287 = vmatprep.subr.mxu0 %v182
    %288 = vmatpush1.msra.mxu0 %v181
    %289 = vmatprep.subr.mxu0 %v244
    %290 = vmatpush2.msra.mxu0 %v243
    %291 = vmatprep.subr.mxu0 %v242
    %292 = vmatpush2.msra.mxu0 %v241
    %293 = vmatprep.subr.mxu0 %v240
    %294 = vmatpush2.msra.mxu0 %v239
    %295 = vmatprep.subr.mxu0 %v238
    %296 = vmatpush2.msra.mxu0 %v237
    %297 = vmatprep.subr.mxu0 %v236
    %298 = vmatpush2.msra.mxu0 %v235
    %299 = vmatprep.subr.mxu0 %v234
    %300 = vmatpush2.msra.mxu0 %v233
    %301 = vmatprep.subr.mxu0 %v232
    %302 = vmatpush2.msra.mxu0 %v231
    %303 = vmatprep.subr.mxu0 %v230
    %304 = vmatpush2.msra.mxu0 %v229
    %305 = vmatprep.subr.mxu0 %v228
    %306 = vmatpush2.msra.mxu0 %v227
    %307 = vmatprep.subr.mxu0 %v226
    %308 = vmatpush2.msra.mxu0 %v225
    %309 = vmatprep.subr.mxu0 %v224
    %310 = vmatpush2.msra.mxu0 %v223
    %311 = vmatprep.subr.mxu0 %v222
    %312 = vmatpush2.msra.mxu0 %v221
    %313 = vmatprep.subr.mxu0 %v220
    %314 = vmatpush2.msra.mxu0 %v219
    %315 = vmatprep.subr.mxu0 %v218
    %316 = vmatpush2.msra.mxu0 %v217
    %317 = vmatprep.subr.mxu0 %v216
    %318 = vmatpush2.msra.mxu0 %v215
    %319 = vmatprep.subr.mxu0 %v214
    %320 = vmatpush2.msra.mxu0 %v213
    %321 = vmatprep.mubr.f32.mxu0 %v180
    %322 = vmatmul.mubr.f32.gmra.mxu0 %v179
    %v323 = vpop.f32.mrf.mxu0
    %v324 = vadd.f32 %v250, %v323
    %v325 = vpop.f32.mrf.mxu0
    %v326 = vadd.f32 %v254, %v325
    %327 = vdwg.mxu0
    %v328 = vmax.f32 %v324, 0.0
    %v329 = vmax.f32 %v326, 0.0
    %v330 = vld [vmem:[%s5] sm:$0xff]
    %v331 = vld [vmem:[%s5 + $0x8] sm:$0xff]
    %v332 = vld [vmem:[%s5 + $0x10] sm:$0xff]
    %v333 = vld [vmem:[%s5 + $0x18] sm:$0xff]
    %v334 = vld [vmem:[%s5 + $0x20] sm:$0xff]
    %v335 = vld [vmem:[%s5 + $0x28] sm:$0xff]
    %v336 = vld [vmem:[%s5 + $0x30] sm:$0xff]
    %v337 = vld [vmem:[%s5 + $0x38] sm:$0xff]
    %v338 = vld [vmem:[%s5 + $0x40] sm:$0xff]
    %v339 = vld [vmem:[%s5 + $0x48] sm:$0xff]
    %v340 = vld [vmem:[%s5 + $0x50] sm:$0xff]
    %v341 = vld [vmem:[%s5 + $0x58] sm:$0xff]
    %v342 = vld [vmem:[%s5 + $0x60] sm:$0xff]
    %v343 = vld [vmem:[%s5 + $0x68] sm:$0xff]
    %v344 = vld [vmem:[%s5 + $0x70] sm:$0xff]
    %v345 = vld [vmem:[%s5 + $0x78] sm:$0xff]
    %v346 = vld [vmem:[%s5 + $0x80] sm:$0xff]
    %v347 = vld [vmem:[%s5 + $0x88] sm:$0xff]
    %v348 = vld [vmem:[%s5 + $0x90] sm:$0xff]
    %v349 = vld [vmem:[%s5 + $0x98] sm:$0xff]
    %v350 = vld [vmem:[%s5 + $0xa0] sm:$0xff]
    %v351 = vld [vmem:[%s5 + $0xa8] sm:$0xff]
    %v352 = vld [vmem:[%s5 + $0xb0] sm:$0xff]
    %v353 = vld [vmem:[%s5 + $0xb8] sm:$0xff]
    %v354 = vld [vmem:[%s5 + $0xc0] sm:$0xff]
    %v355 = vld [vmem:[%s5 + $0xc8] sm:$0xff]
    %v356 = vld [vmem:[%s5 + $0xd0] sm:$0xff]
    %v357 = vld [vmem:[%s5 + $0xd8] sm:$0xff]
    %v358 = vld [vmem:[%s5 + $0xe0] sm:$0xff]
    %v359 = vld [vmem:[%s5 + $0xe8] sm:$0xff]
    %v360 = vld [vmem:[%s5 + $0xf0] sm:$0xff]
    %v361 = vld [vmem:[%s5 + $0xf8] sm:$0xff]
    %v362 = vld [vmem:[%s6] sm:$0x1]
    %v364 = vlaneseq
    %v365 = vshrl.u32 %v364, 7
    %v366 = vsub.s32 0, %v365
    %v367 = vrot.slane %v362, %v366
    %369 = vmatprep.subr.mxu0 0.0
    %370 = vmatpush1.msra.mxu0 %v345
    %371 = vmatprep.subr.mxu0 0.0
    %372 = vmatpush1.msra.mxu0 %v344
    %373 = vmatprep.subr.mxu0 0.0
    %374 = vmatpush1.msra.mxu0 %v343
    %375 = vmatprep.subr.mxu0 0.0
    %376 = vmatpush1.msra.mxu0 %v342
    %377 = vmatprep.subr.mxu0 0.0
    %378 = vmatpush1.msra.mxu0 %v341
    %379 = vmatprep.subr.mxu0 0.0
    %380 = vmatpush1.msra.mxu0 %v340
    %381 = vmatprep.subr.mxu0 0.0
    %382 = vmatpush1.msra.mxu0 %v339
    %383 = vmatprep.subr.mxu0 0.0
    %384 = vmatpush1.msra.mxu0 %v338
    %385 = vmatprep.subr.mxu0 0.0
    %386 = vmatpush1.msra.mxu0 %v337
    %387 = vmatprep.subr.mxu0 0.0
    %388 = vmatpush1.msra.mxu0 %v336
    %389 = vmatprep.subr.mxu0 0.0
    %390 = vmatpush1.msra.mxu0 %v335
    %391 = vmatprep.subr.mxu0 0.0
    %392 = vmatpush1.msra.mxu0 %v334
    %393 = vmatprep.subr.mxu0 0.0
    %394 = vmatpush1.msra.mxu0 %v333
    %395 = vmatprep.subr.mxu0 0.0
    %396 = vmatpush1.msra.mxu0 %v332
    %397 = vmatprep.subr.mxu0 0.0
    %398 = vmatpush1.msra.mxu0 %v331
    %399 = vmatprep.subr.mxu0 0.0
    %400 = vmatpush1.msra.mxu0 %v330
    %401 = vmatprep.subr.mxu0 0.0
    %402 = vmatpush2.msra.mxu0 %v361
    %403 = vmatprep.subr.mxu0 0.0
    %404 = vmatpush2.msra.mxu0 %v360
    %405 = vmatprep.subr.mxu0 0.0
    %406 = vmatpush2.msra.mxu0 %v359
    %407 = vmatprep.subr.mxu0 0.0
    %408 = vmatpush2.msra.mxu0 %v358
    %409 = vmatprep.subr.mxu0 0.0
    %410 = vmatpush2.msra.mxu0 %v357
    %411 = vmatprep.subr.mxu0 0.0
    %412 = vmatpush2.msra.mxu0 %v356
    %413 = vmatprep.subr.mxu0 0.0
    %414 = vmatpush2.msra.mxu0 %v355
    %415 = vmatprep.subr.mxu0 0.0
    %416 = vmatpush2.msra.mxu0 %v354
    %417 = vmatprep.subr.mxu0 0.0
    %418 = vmatpush2.msra.mxu0 %v353
    %419 = vmatprep.subr.mxu0 0.0
    %420 = vmatpush2.msra.mxu0 %v352
    %421 = vmatprep.subr.mxu0 0.0
    %422 = vmatpush2.msra.mxu0 %v351
    %423 = vmatprep.subr.mxu0 0.0
    %424 = vmatpush2.msra.mxu0 %v350
    %425 = vmatprep.subr.mxu0 0.0
    %426 = vmatpush2.msra.mxu0 %v349
    %427 = vmatprep.subr.mxu0 0.0
    %428 = vmatpush2.msra.mxu0 %v348
    %429 = vmatprep.subr.mxu0 0.0
    %430 = vmatpush2.msra.mxu0 %v347
    %431 = vmatprep.subr.mxu0 0.0
    %432 = vmatpush2.msra.mxu0 %v346
    %433 = vmatprep.mubr.f32.mxu0 %v329
    %434 = vmatmul.mubr.f32.gmra.mxu0 %v328
    %v435 = vpop.f32.mrf.mxu0
    %v436 = vadd.f32 %v367, %v435
    %v437 = vpop.f32.mrf.mxu0
    %438 = vdwg.mxu0
    %vm439 = vcmask 31744
    %440 = vst.msk [vmem:[%s7] sm:$0xff] %vm439, %v436
    // Predicated region
    $region42: #{tpu_custom_call.1} parent=1 // pred_check
      _
    $region43: #{tpu_custom_call.1} parent=1 // pred_check_branch
      %442 = sbr.rel (0) target = $region45
    $region44: #{tpu_custom_call.1} parent=1 // pred_region
      _
    $region45: #{tpu_custom_call.1} parent=1 // pred_fallthru
      _
    // Predicated region
    $region46: #{tpu_custom_call.1} parent=1 // pred_check
      _
    $region47: #{tpu_custom_call.1} parent=1 // pred_check_branch
      %444 = sbr.rel (0) target = $region49
    $region48: #{tpu_custom_call.1} parent=1 // pred_region
      _
    $region49: #{tpu_custom_call.1} parent=1 // pred_fallthru
      _
    %445 = vsyncpa [#allocation3], 1
    %446 = vsyncpa [#allocation5], 1

</llo_original>
